<compile_context>
chip_gen: v7x
topology: tpu7x:2x2x1
jax: 0.10.0
libtpu: 0.0.40
codegen_flags: <defaults>
</compile_context>

<pallas_src>
import functools
import math

import jax
import jax.numpy as jnp
from jax.experimental import pallas as pl
from jax.experimental.pallas import tpu as pltpu


# ----------------------------- helpers --------------------------------------

def _mish(y):
    # mish(y) = y * tanh(softplus(y)); numerically stable softplus (f32).
    sp = jnp.maximum(y, 0.0) + jnp.log1p(jnp.exp(-jnp.abs(y)))
    return y * jnp.tanh(sp)


def _pick_tile(dim, mults, max_tile):
    """Largest tile <= max_tile dividing `dim` that is a multiple of one of
    `mults` (preference order); falls back to the full dim (always legal)."""
    for m in mults:
        if dim % m == 0:
            t = (min(max_tile, dim) // m) * m
            while t >= m and dim % t != 0:
                t -= m
            if t >= m:
                return t
    return dim


def _pick_seq_tile(L, max_tile=256):
    """Sequence-axis tile (not in the last two dims, so only needs to divide L)."""
    if L <= max_tile:
        return L
    for t in range(max_tile, 0, -1):
        if L % t == 0 and t % 8 == 0:
            return t
    for t in range(max_tile, 0, -1):
        if L % t == 0:
            return t
    return L


# ----------------------------- Linear ---------------------------------------

def _linear_kernel(x_ref, w_ref, b_ref, o_ref, *, mish):
    # x_ref: [tm, K] bf16, w_ref: [K, tn] bf16, b_ref: [1, tn] f32
    y = jnp.dot(x_ref[...], w_ref[...], preferred_element_type=jnp.float32)
    y = y + b_ref[...]
    if mish:
        y = _mish(y)
    o_ref[...] = y.astype(o_ref.dtype)


def pallas_linear(x, w, b, mish=False, out_dtype=jnp.float32):
    # Weights are expected pre-cast to bf16 (done once in init_params).
    M, K = x.shape
    N = w.shape[1]
    tm = _pick_tile(M, (16, 8), 512)
    tn = _pick_tile(N, (256, 128), 512)
    grid = (M // tm, N // tn)
    return pl.pallas_call(
        functools.partial(_linear_kernel, mish=mish),
        out_shape=jax.ShapeDtypeStruct((M, N), out_dtype),
        grid=grid,
        in_specs=[
            pl.BlockSpec((tm, K), lambda i, j: (i, 0)),
            pl.BlockSpec((K, tn), lambda i, j: (0, j)),
            pl.BlockSpec((1, tn), lambda i, j: (0, j)),
        ],
        out_specs=pl.BlockSpec((tm, tn), lambda i, j: (i, j)),
        compiler_params=pltpu.CompilerParams(
            dimension_semantics=("parallel", "parallel")),
    )(x.astype(jnp.bfloat16), w, b)


# ------------------- Conv1d('same') + Mish + max_pool ------------------------

def _conv_mish_pool_kernel(x_ref, w_ref, b_ref, o_ref, *, L, Kmax, pk, pout):
    # x_ref: [L + Kmax - 1, C] bf16 (padded input, batch squeezed)
    # w_ref: [Kmax, C, O] bf16 (all filter sizes fused, O padded to 128-mult)
    # b_ref: [1, O] f32 ; o_ref: [pout, O] f32
    acc = jnp.dot(x_ref[0:L, :], w_ref[0], preferred_element_type=jnp.float32)
    for k in range(1, Kmax):          # short static loop (Kmax ~ 5)
        acc += jnp.dot(x_ref[k:k + L, :], w_ref[k],
                       preferred_element_type=jnp.float32)
    acc = _mish(acc + b_ref[...])
    # max_pool1d(kernel=pk, stride=pk, floor): pout contiguous-slab reductions.
    rows = []
    for t in range(pout):
        rows.append(jnp.max(acc[t * pk:(t + 1) * pk, :], axis=0, keepdims=True))
    o_ref[...] = jnp.concatenate(rows, axis=0)


def pallas_conv_mish_pool(x, w_fused, b_fused, pool_num=10):
    # x: [B, L, C] f32 ; w_fused: [Kmax, C, O_pad] bf16 ; b_fused: [1, O_pad] f32
    B, L, C = x.shape
    Kmax, _, O = w_fused.shape
    lp = (Kmax - 1) // 2              # PyTorch padding='same' (odd filter sizes)
    rp = (Kmax - 1) - lp
    xp = jnp.pad(x.astype(jnp.bfloat16), ((0, 0), (lp, rp), (0, 0)))
    Lp = L + Kmax - 1
    pk = L // pool_num                # ceil(L // pool_num) == L // pool_num
    pout = L // pk                    # floor mode (matches F.max_pool1d default)
    return pl.pallas_call(
        functools.partial(_conv_mish_pool_kernel, L=L, Kmax=Kmax, pk=pk, pout=pout),
        out_shape=jax.ShapeDtypeStruct((B, pout, O), jnp.float32),
        grid=(B,),
        in_specs=[
            pl.BlockSpec((None, Lp, C), lambda b: (b, 0, 0)),
            pl.BlockSpec((Kmax, C, O), lambda b: (0, 0, 0)),
            pl.BlockSpec((1, O), lambda b: (0, 0)),
        ],
        out_specs=pl.BlockSpec((None, pout, O), lambda b: (b, 0, 0)),
        compiler_params=pltpu.CompilerParams(
            dimension_semantics=("parallel",)),
    )(xp, w_fused, b_fused)


# ------------------------- flash-style attention -----------------------------

def _attn_kernel(q_ref, k_ref, v_ref, o_ref, m_sc, l_sc, acc_sc, *, n_heads):
    # q_ref: [tq, H, dh] bf16, k_ref/v_ref: [tk, H, dh] bf16
    # o_ref: [tq, H, dh] bf16 ; scratch m/l: [H, tq, 1] f32, acc: [H, tq, dh] f32
    # 1/sqrt(dh) is pre-folded into the Q projection weights.
    ki = pl.program_id(2)

    @pl.when(ki == 0)
    def _():
        m_sc[...] = jnp.full(m_sc.shape, -jnp.inf, m_sc.dtype)
        l_sc[...] = jnp.zeros(l_sc.shape, l_sc.dtype)
        acc_sc[...] = jnp.zeros(acc_sc.shape, acc_sc.dtype)

    s = jnp.einsum('qhd,khd->hqk', q_ref[...], k_ref[...],
                   preferred_element_type=jnp.float32)
    m_prev = m_sc[...]
    m_new = jnp.maximum(m_prev, jnp.max(s, axis=-1, keepdims=True))
    alpha = jnp.exp(m_prev - m_new)
    p = jnp.exp(s - m_new)
    l_sc[...] = alpha * l_sc[...] + jnp.sum(p, axis=-1, keepdims=True)
    m_sc[...] = m_new
    pv = jnp.einsum('hqk,khd->hqd', p.astype(jnp.bfloat16), v_ref[...],
                    preferred_element_type=jnp.float32)
    acc_sc[...] = alpha * acc_sc[...] + pv

    @pl.when(ki == pl.num_programs(2) - 1)
    def _():
        inv = pl.reciprocal(l_sc[...], approx=True)       # [H, tq, 1]
        for h in range(n_heads):                          # head perm in-kernel
            o_ref[:, h, :] = (acc_sc[h] * inv[h]).astype(o_ref.dtype)


def pallas_mhsa(qkv):
    # qkv: [B, L, 3, H, dh] bf16 (fused Q/K/V projection output, no transposes)
    B, L, _, H, dh = qkv.shape
    tq = _pick_seq_tile(L)
    tk = _pick_seq_tile(L)
    grid = (B, L // tq, L // tk)
    q_spec = pl.BlockSpec((None, tq, None, H, dh), lambda b, qi, ki: (b, qi, 0, 0, 0))
    k_spec = pl.BlockSpec((None, tk, None, H, dh), lambda b, qi, ki: (b, ki, 1, 0, 0))
    v_spec = pl.BlockSpec((None, tk, None, H, dh), lambda b, qi, ki: (b, ki, 2, 0, 0))
    o_spec = pl.BlockSpec((None, tq, H, dh), lambda b, qi, ki: (b, qi, 0, 0))
    return pl.pallas_call(
        functools.partial(_attn_kernel, n_heads=H),
        out_shape=jax.ShapeDtypeStruct((B, L, H, dh), jnp.bfloat16),
        grid=grid,
        in_specs=[q_spec, k_spec, v_spec],
        out_specs=o_spec,
        scratch_shapes=[
            pltpu.VMEM((H, tq, 1), jnp.float32),
            pltpu.VMEM((H, tq, 1), jnp.float32),
            pltpu.VMEM((H, tq, dh), jnp.float32),
        ],
        compiler_params=pltpu.CompilerParams(
            dimension_semantics=("parallel", "parallel", "arbitrary")),
    )(qkv, qkv, qkv)


# ------------------------------ fused FNN ------------------------------------

def _fnn_kernel(x_ref, w1_ref, b1_ref, w2_ref, b2_ref, w3_ref, b3_ref, o_ref):
    # Fused Linear->Mish x3; intermediates stay in VMEM/vregs.
    h = _mish(jnp.dot(x_ref[...], w1_ref[...],
                      preferred_element_type=jnp.float32) + b1_ref[...])
    h = _mish(jnp.dot(h.astype(jnp.bfloat16), w2_ref[...],
                      preferred_element_type=jnp.float32) + b2_ref[...])
    h = _mish(jnp.dot(h.astype(jnp.bfloat16), w3_ref[...],
                      preferred_element_type=jnp.float32) + b3_ref[...])
    o_ref[...] = h.astype(o_ref.dtype)


def pallas_fnn(x, w1, b1, w2, b2, w3, b3):
    M, K = x.shape
    N = w3.shape[1]
    tm = _pick_tile(M, (16, 8), 256)
    grid = (M // tm,)
    return pl.pallas_call(
        _fnn_kernel,
        out_shape=jax.ShapeDtypeStruct((M, N), jnp.float32),
        grid=grid,
        in_specs=[
            pl.BlockSpec((tm, K), lambda i: (i, 0)),
            pl.BlockSpec(w1.shape, lambda i: (0, 0)),
            pl.BlockSpec(b1.shape, lambda i: (0, 0)),
            pl.BlockSpec(w2.shape, lambda i: (0, 0)),
            pl.BlockSpec(b2.shape, lambda i: (0, 0)),
            pl.BlockSpec(w3.shape, lambda i: (0, 0)),
            pl.BlockSpec(b3.shape, lambda i: (0, 0)),
        ],
        out_specs=pl.BlockSpec((tm, N), lambda i: (i, 0)),
        compiler_params=pltpu.CompilerParams(
            dimension_semantics=("parallel",)),
    )(x.astype(jnp.bfloat16), w1, b1, w2, b2, w3, b3)


# ------------------------------- model glue ----------------------------------

def sinusoidal_pe(L, D):
    pos = jnp.arange(L, dtype=jnp.float32)[:, None]
    i = jnp.arange(0, D, 2, dtype=jnp.float32)
    div = jnp.exp(-(jnp.log(10000.0) / D) * i)
    pe = jnp.zeros((L, D), jnp.float32)
    pe = pe.at[:, 0::2].set(jnp.sin(pos * div))
    pe = pe.at[:, 1::2].set(jnp.cos(pos * div))
    return pe


def attention_encode(x, p, n_heads=8):
    # TODO(synk): AttentionEncode source unavailable; synthesized as standard
    # multi-head self-attention with output projection + residual.
    B, L, D = x.shape
    dh = D // n_heads
    qkv = pallas_linear(x.reshape(B * L, D), p["w_qkv"], p["b_qkv"],
                        out_dtype=jnp.bfloat16)            # [B*L, 3D] bf16
    o = pallas_mhsa(qkv.reshape(B, L, 3, n_heads, dh))     # [B, L, H, dh] bf16
    o = pallas_linear(o.reshape(B * L, D), p["wo"], p["bo"])
    return x + o.reshape(B, L, D)


def textcnn(x, p, pool_num=10):
    # x: [B, L, C] (channels-last version of PyTorch's data.permute(0, 2, 1))
    B = x.shape[0]
    pooled = pallas_conv_mish_pool(x, p["w_conv"], p["b_conv"], pool_num)
    pooled = pooled[:, :, :p["o_real"]]                    # drop lane padding
    # PyTorch flattens each conv's pooled output channel-major, then concatenates;
    # with fused [fs0-filters | fs1-filters | ...] channel ordering this equals
    # transpose + flatten of the fused pooled output.
    cat = pooled.transpose(0, 2, 1).reshape(B, -1)
    # TODO(synk): FAN_encode source unavailable; synthesized as a
    # dimension-preserving Linear(dim, dim) + Mish.
    return pallas_linear(cat, p["fan_w"], p["fan_b"], mish=True)


def branch(ids, emb, pe, attn_p, cnn_p, pool_num):
    x = jnp.take(emb, ids, axis=0)                         # embedding lookup (glue)
    # TODO(synk): PositionalEncoding source unavailable; synthesized sinusoidal
    # PE with PE(x) = x + pe; the module computes PE(x) + x = 2*x + pe (eval).
    x = (x + pe[None]) + x
    x = attention_encode(x, attn_p)
    return textcnn(x, cnn_p, pool_num)


def model_forward(params, dna_ids, prot_ids, pool_num=10):
    dna_feat = branch(dna_ids, params["emb_dna"], params["pe_dna"],
                      params["attn_dna"], params["cnn_dna"], pool_num)
    prot_feat = branch(prot_ids, params["emb_prot"], params["pe_prot"],
                       params["attn_prot"], params["cnn_prot"], pool_num)
    h = jnp.concatenate([dna_feat, prot_feat], axis=1)
    # fnn1 -> fnn2 -> fnn3 fused into one kernel (intermediates stay on-chip).
    return pallas_fnn(h,
                      params["fnn1_w"], params["fnn1_b"],
                      params["fnn2_w"], params["fnn2_b"],
                      params["fnn3_w"], params["fnn3_b"])


# ------------------------------ params init ----------------------------------

def _lin_init(key, fan_in, fan_out):
    kw, kb = jax.random.split(key)
    w = jax.random.normal(kw, (fan_in, fan_out), jnp.float32) / math.sqrt(fan_in)
    b = 0.01 * jax.random.normal(kb, (1, fan_out), jnp.float32)
    return w, b


def _fuse_conv_params(convs, in_channels, n_filters):
    """Fold per-filter-size 'same' convs into one [Kmax, C, O_pad] kernel.
    Each smaller filter is zero-padded/shifted so its own 'same' center lines up
    with the Kmax padding; output channels are zero-padded to a 128 multiple."""
    Kmax = max(int(w.shape[0]) for w, _ in convs)
    lp_max = (Kmax - 1) // 2
    ws, bs = [], []
    for w, b in convs:
        fs = int(w.shape[0])
        off = lp_max - (fs - 1) // 2
        wp = jnp.zeros((Kmax, in_channels, n_filters), jnp.float32)
        wp = wp.at[off:off + fs].set(w)
        ws.append(wp)
        bs.append(b)
    w_fused = jnp.concatenate(ws, axis=2)
    b_fused = jnp.concatenate(bs, axis=1)
    o_real = int(w_fused.shape[2])
    o_pad = max(128, ((o_real + 127) // 128) * 128)
    w_fused = jnp.pad(w_fused, ((0, 0), (0, 0), (0, o_pad - o_real)))
    b_fused = jnp.pad(b_fused, ((0, 0), (0, o_pad - o_real)))
    return w_fused.astype(jnp.bfloat16), b_fused, o_real


def init_params(key, *, n_filters, fs_dna, fs_prot, d_dna, d_prot,
                l_dna, l_prot, pool_num, n_heads=8):
    keys = iter(jax.random.split(key, 64))
    bf16 = jnp.bfloat16
    params = {}
    params["emb_dna"] = 0.1 * jax.random.normal(next(keys), (4 ** 5 + 1, d_dna),
                                                jnp.float32)
    params["emb_prot"] = 0.1 * jax.random.normal(next(keys), (21, d_prot),
                                                 jnp.float32)
    params["pe_dna"] = sinusoidal_pe(l_dna, d_dna)
    params["pe_prot"] = sinusoidal_pe(l_prot, d_prot)

    def attn_init(d):
        dh = d // n_heads
        scale = 1.0 / math.sqrt(dh)                   # folded into Q (exact, f32)
        wq, bq = _lin_init(next(keys), d, d)
        wk, bk = _lin_init(next(keys), d, d)
        wv, bv = _lin_init(next(keys), d, d)
        wo, bo = _lin_init(next(keys), d, d)
        return {"w_qkv": jnp.concatenate([wq * scale, wk, wv], axis=1).astype(bf16),
                "b_qkv": jnp.concatenate([bq * scale, bk, bv], axis=1),
                "wo": wo.astype(bf16), "bo": bo}

    params["attn_dna"] = attn_init(d_dna)
    params["attn_prot"] = attn_init(d_prot)

    def cnn_init(d, fsizes):
        convs = []
        for fs in fsizes:
            kw, kb = jax.random.split(next(keys))
            w = jax.random.normal(kw, (fs, d, n_filters),
                                  jnp.float32) / math.sqrt(d * fs)
            b = 0.01 * jax.random.normal(kb, (1, n_filters), jnp.float32)
            convs.append((w, b))
        w_conv, b_conv, o_real = _fuse_conv_params(convs, d, n_filters)
        fan_dim = len(fsizes) * n_filters * pool_num
        fan_w, fan_b = _lin_init(next(keys), fan_dim, fan_dim)
        return {"w_conv": w_conv, "b_conv": b_conv, "o_real": o_real,
                "fan_w": fan_w.astype(bf16), "fan_b": fan_b}

    params["cnn_dna"] = cnn_init(d_dna, fs_dna)
    params["cnn_prot"] = cnn_init(d_prot, fs_prot)

    fnn_in = (len(fs_dna) + len(fs_prot)) * n_filters * pool_num
    w1, b1 = _lin_init(next(keys), fnn_in, 1024)
    w2, b2 = _lin_init(next(keys), 1024, 512)
    w3, b3 = _lin_init(next(keys), 512, 256)
    params["fnn1_w"], params["fnn1_b"] = w1.astype(bf16), b1
    params["fnn2_w"], params["fnn2_b"] = w2.astype(bf16), b2
    params["fnn3_w"], params["fnn3_b"] = w3.astype(bf16), b3
    return params


# ---------------------------------- main --------------------------------------

if __name__ == "__main__":
    B = 2
    n_filters = 16
    fs_dna = (3, 5)
    fs_prot = (3, 5)
    d_dna, d_prot = 64, 96        # small stand-ins for 768 / 1280
    l_dna, l_prot = 40, 30        # small stand-ins for 446 / 1022
    pool_num = 10

    key = jax.random.PRNGKey(0)
    kp, kd, kpr = jax.random.split(key, 3)
    params = init_params(kp, n_filters=n_filters, fs_dna=fs_dna,
                         fs_prot=fs_prot, d_dna=d_dna, d_prot=d_prot,
                         l_dna=l_dna, l_prot=l_prot, pool_num=pool_num)
    dna_ids = jax.random.randint(kd, (B, l_dna), 0, 4 ** 5 + 1, dtype=jnp.int32)
    prot_ids = jax.random.randint(kpr, (B, l_prot), 0, 21, dtype=jnp.int32)

    out = model_forward(params, dna_ids, prot_ids, pool_num)
    out = jax.block_until_ready(out)
    assert out.shape == (B, 256) and out.dtype == jnp.float32
    assert bool(jnp.all(jnp.isfinite(out)))
    print("KERNEL_OK")
</pallas_src>

<mosaic_0001>
module attributes {stable_mosaic.version = 11 : i64} {
  func.func @_linear_kernel(%arg0: i32, %arg1: i32, %arg2: memref<80x64xbf16, #tpu.memory_space<vmem>>, %arg3: memref<64x192xbf16, #tpu.memory_space<vmem>>, %arg4: memref<1x192xf32, #tpu.memory_space<vmem>>, %arg5: memref<80x192xbf16, #tpu.memory_space<vmem>>) attributes {dimension_semantics = [#tpu.dimension_semantics<parallel>, #tpu.dimension_semantics<parallel>], iteration_bounds = array<i64: 1, 1>, scalar_prefetch = 0 : i64, scratch_operands = 0 : i64, tpu.core_type = #tpu.core_type<tc>, window_params = [{transform_indices = @transform_0, window_bounds = array<i64: 80, 64>}, {transform_indices = @transform_1, window_bounds = array<i64: 64, 192>}, {transform_indices = @transform_2, window_bounds = array<i64: 1, 192>}, {transform_indices = @transform_3, window_bounds = array<i64: 80, 192>}]} {
    %c0 = arith.constant 0 : index
    %c0_0 = arith.constant 0 : index
    %0 = vector.load %arg2[%c0, %c0_0] : memref<80x64xbf16, #tpu.memory_space<vmem>>, vector<80x64xbf16>
    %c0_1 = arith.constant 0 : index
    %c0_2 = arith.constant 0 : index
    %1 = vector.load %arg3[%c0_1, %c0_2] : memref<64x192xbf16, #tpu.memory_space<vmem>>, vector<64x192xbf16>
    %cst = arith.constant dense<0.000000e+00> : vector<80x192xf32>
    %2 = tpu.matmul %0, %1, %cst {dimension_numbers = #tpu.dot_dimension_numbers<[1], [0], [0], [1], [0, 0, 1, 1], [], []>} : vector<80x64xbf16>, vector<64x192xbf16>, vector<80x192xf32> -> vector<80x192xf32>
    %c0_3 = arith.constant 0 : index
    %c0_4 = arith.constant 0 : index
    %3 = vector.load %arg4[%c0_3, %c0_4] : memref<1x192xf32, #tpu.memory_space<vmem>>, vector<1x192xf32>
    %4 = vector.broadcast %3 : vector<1x192xf32> to vector<80x192xf32>
    %5 = arith.addf %2, %4 : vector<80x192xf32>
    %6 = arith.truncf %5 : vector<80x192xf32> to vector<80x192xbf16>
    %c0_5 = arith.constant 0 : index
    %c0_6 = arith.constant 0 : index
    %7 = vector.load %arg5[%c0_5, %c0_6] : memref<80x192xbf16, #tpu.memory_space<vmem>>, vector<80x192xbf16>
    tpu.vector_store %arg5[%c0_5, %c0_6], %6 {strides = array<i32>} : memref<80x192xbf16, #tpu.memory_space<vmem>>, vector<80x192xbf16>,
    return
  }
  func.func @transform_0(%arg0: i32, %arg1: i32) -> (i32, i32) {
    %c0_i32 = arith.constant 0 : i32
    %c0_i32_0 = arith.constant 0 : i32
    return %arg0, %c0_i32 : i32, i32
  }
  func.func @transform_1(%arg0: i32, %arg1: i32) -> (i32, i32) {
    %c0_i32 = arith.constant 0 : i32
    %c0_i32_0 = arith.constant 0 : i32
    return %c0_i32, %arg1 : i32, i32
  }
  func.func @transform_2(%arg0: i32, %arg1: i32) -> (i32, i32) {
    %c0_i32 = arith.constant 0 : i32
    %c0_i32_0 = arith.constant 0 : i32
    return %c0_i32, %arg1 : i32, i32
  }
  func.func @transform_3(%arg0: i32, %arg1: i32) -> (i32, i32) {
    %c0_i32 = arith.constant 0 : i32
    return %arg0, %arg1 : i32, i32
  }
}

</mosaic_0001>

<llo_original>
// kernel: tpu_custom_call.1
$region0: #{tpu_custom_call.1}
  #allocation0 [shape = 'u32[]', space=smem, size = 0x4, offset = 0x4, fixed_abs, tag = 'smem constant byte address 0x4 - core index']
  #allocation1 [shape = 'u32[144,128]{1,0:T(1,128)}', space=vmem, size = 0x12000, scoped, tag = 'internal scratch']
  %s0 = inlined_call_operand.vmem [shape: bf16[80,64], index: 0, kind: input, shape index: {}]
  %s1 = inlined_call_operand.vmem [shape: bf16[64,192], index: 1, kind: input, shape index: {}]
  %s2 = inlined_call_operand.vmem [shape: f32[1,192], index: 2, kind: input, shape index: {}]
  %s3 = inlined_call_operand.hbm [shape: bf16[80,192], index: 3, kind: output, shape index: {}]
  %s4 = sld [smem:[#allocation0]]
  $region22: #{tpu_custom_call.1} parent=0
    _
  %s6 = ssub.s32 1, %s4
  %s7 = scalar_select 0, %s6, %s4
  $region1: #{tpu_custom_call.1} parent=0
    #allocation2 [shape = 'u8[40960]{0}', space=vmem, size = 0xa000, scoped, tag = 'output window, operand 0, single buffered']
    #allocation3 [shape = 's32[1]{0}', space=sflag, size = 0x4, scoped, tag = 'scoped memory for tpu_custom_call.1']
    %8 = vsyncpa [#allocation3], 0
    // Predicated region
    $region2: #{tpu_custom_call.1} parent=1 // pred_check
      _
    $region3: #{tpu_custom_call.1} parent=1 // pred_check_branch
      %10 = sbr.rel (0) target = $region5
    $region4: #{tpu_custom_call.1} parent=1 // pred_region
      _
    $region5: #{tpu_custom_call.1} parent=1 // pred_fallthru
      _
    // Predicated region
    $region6: #{tpu_custom_call.1} parent=1 // pred_check
      _
    $region7: #{tpu_custom_call.1} parent=1 // pred_check_branch
      %12 = sbr.rel (0) target = $region9
    $region8: #{tpu_custom_call.1} parent=1 // pred_region
      _
    $region9: #{tpu_custom_call.1} parent=1 // pred_fallthru
      _
    // Predicated region
    $region10: #{tpu_custom_call.1} parent=1 // pred_check
      _
    $region11: #{tpu_custom_call.1} parent=1 // pred_check_branch
      %14 = sbr.rel (0) target = $region13
    $region12: #{tpu_custom_call.1} parent=1 // pred_region
      _
    $region13: #{tpu_custom_call.1} parent=1 // pred_fallthru
      _
    %v16 = vld [vmem:[%s0] sm:$0xf]
    %v17 = vld [vmem:[%s0 + $0x4] sm:$0xf]
    %v18 = vld [vmem:[%s0 + $0x8] sm:$0xf]
    %v19 = vld [vmem:[%s0 + $0xc] sm:$0xf]
    %v20 = vld [vmem:[%s0 + $0x10] sm:$0xf]
    %v21 = vld [vmem:[%s0 + $0x14] sm:$0xf]
    %v22 = vld [vmem:[%s0 + $0x18] sm:$0xf]
    %v23 = vld [vmem:[%s0 + $0x1c] sm:$0xf]
    %v24 = vld [vmem:[%s0 + $0x20] sm:$0xf]
    %v25 = vld [vmem:[%s0 + $0x24] sm:$0xf]
    %v26 = vld [vmem:[%s1] sm:$0xff]
    %v27 = vld [vmem:[%s1 + $0x8] sm:$0xff]
    %v28 = vld [vmem:[%s1 + $0x10] sm:$0xff]
    %v29 = vld [vmem:[%s1 + $0x18] sm:$0xff]
    %v30 = vld [vmem:[%s1 + $0x20] sm:$0xff]
    %v31 = vld [vmem:[%s1 + $0x28] sm:$0xff]
    %v32 = vld [vmem:[%s1 + $0x30] sm:$0xff]
    %v33 = vld [vmem:[%s1 + $0x38] sm:$0xff]
    %v34 = vld [vmem:[%s2] sm:$0x3]
    %v36 = vlaneseq
    %v37 = vshrl.u32 %v36, 7
    %v38 = vsub.s32 0, %v37
    %v39 = vrot.slane %v34, %v38
    %v40 = vlaneseq
    %v41 = vshrl.u32 %v40, 7
    %v42 = vsub.s32 1, %v41
    %v43 = vrot.slane %v34, %v42
    %v56 = vunpack.c.l.b16 %v16
    %v57 = vunpack.c.l.b16 %v17
    %v58 = vunpack.c.l.b16 %v18
    %v59 = vunpack.c.l.b16 %v19
    %v60 = vunpack.c.l.b16 %v20
    %v61 = vunpack.c.l.b16 %v21
    %v62 = vunpack.c.l.b16 %v22
    %v63 = vunpack.c.l.b16 %v23
    %v64 = vunpack.c.l.b16 %v24
    %v65 = vunpack.c.l.b16 %v25
    %v66 = vpack.c.b16 %v57, %v56
    %v67 = vpack.c.b16 %v59, %v58
    %v68 = vpack.c.b16 %v61, %v60
    %v69 = vpack.c.b16 %v63, %v62
    %v70 = vpack.c.b16 %v65, %v64
    %v79 = vunpack.c.l.b16 %v26
    %v80 = vunpack.c.h.b16 %v26
    %v81 = vunpack.c.l.b16 %v27
    %v82 = vunpack.c.h.b16 %v27
    %v83 = vunpack.c.l.b16 %v28
    %v84 = vunpack.c.h.b16 %v28
    %v85 = vunpack.c.l.b16 %v29
    %v86 = vunpack.c.h.b16 %v29
    %v87 = vunpack.c.l.b16 %v30
    %v88 = vunpack.c.h.b16 %v30
    %v89 = vunpack.c.l.b16 %v31
    %v90 = vunpack.c.h.b16 %v31
    %v91 = vunpack.c.l.b16 %v32
    %v92 = vunpack.c.h.b16 %v32
    %v93 = vunpack.c.l.b16 %v33
    %v94 = vunpack.c.h.b16 %v33
    %v95 = vpack.c.b16 %v81, %v79
    %v96 = vpack.c.b16 %v82, %v80
    %v97 = vpack.c.b16 %v85, %v83
    %v98 = vpack.c.b16 %v86, %v84
    %v99 = vpack.c.b16 %v89, %v87
    %v100 = vpack.c.b16 %v90, %v88
    %v101 = vpack.c.b16 %v93, %v91
    %v102 = vpack.c.b16 %v94, %v92
    %vm111 = vcmask 523264
    %v113 = vsel %vm111, %v66, 0
    %v116 = vsel %vm111, %v67, 0
    %v119 = vsel %vm111, %v68, 0
    %v122 = vsel %vm111, %v69, 0
    %v125 = vsel %vm111, %v70, 0
    %127 = vmatprep.subr.bf16.mxu0 %v96
    %128 = vmatpush1.bf16.msra.mxu0 %v95
    %129 = vmatprep.subr.bf16.mxu0 %v98
    %130 = vmatpush1.bf16.msra.mxu0 %v97
    %131 = vmatprep.subr.bf16.mxu0 %v100
    %132 = vmatpush1.bf16.msra.mxu0 %v99
    %133 = vmatprep.subr.bf16.mxu0 %v102
    %134 = vmatpush1.bf16.msra.mxu0 %v101
    %135 = vmatprep.subr.bf16.mxu0 0
    %136 = vmatpush1.bf16.msra.mxu0 0
    %137 = vmatprep.subr.bf16.mxu0 0
    %138 = vmatpush1.bf16.msra.mxu0 0
    %139 = vmatprep.subr.bf16.mxu0 0
    %140 = vmatpush1.bf16.msra.mxu0 0
    %141 = vmatprep.subr.bf16.mxu0 0
    %142 = vmatpush1.bf16.msra.mxu0 0
    %143 = vmatprep.subr.bf16.mxu0 0
    %144 = vmatpush1.bf16.msra.mxu0 0
    %145 = vmatprep.subr.bf16.mxu0 0
    %146 = vmatpush1.bf16.msra.mxu0 0
    %147 = vmatprep.subr.bf16.mxu0 0
    %148 = vmatpush1.bf16.msra.mxu0 0
    %149 = vmatprep.subr.bf16.mxu0 0
    %150 = vmatpush1.bf16.msra.mxu0 0
    %151 = vmatprep.subr.bf16.mxu0 0
    %152 = vmatpush1.bf16.msra.mxu0 0
    %153 = vmatprep.subr.bf16.mxu0 0
    %154 = vmatpush1.bf16.msra.mxu0 0
    %155 = vmatprep.subr.bf16.mxu0 0
    %156 = vmatpush1.bf16.msra.mxu0 0
    %157 = vmatprep.subr.bf16.mxu0 0
    %158 = vmatpush1.bf16.msra.mxu0 0
    %159 = vmatprep.mubr.bf16.mxu0 0
    %160 = vmatmul.mubr.bf16.gmra.mrb[0].mxu0 %v113
    %v161 = vpop.f32.mrb[0].mxu0
    %v162 = vadd.f32 %v39, %v161
    %v163 = vpop.f32.mrb[0].mxu0
    %v164 = vadd.f32 %v43, %v163
    %v165 = vpop.f32.mrb[0].mxu0
    %v166 = vadd.f32 %v39, %v165
    %v167 = vpop.f32.mrb[0].mxu0
    %v168 = vadd.f32 %v43, %v167
    %169 = vmatprep.mubr.bf16.mxu0 0
    %170 = vmatmul.mubr.bf16.gmra.mrb[0].mxu0 %v116
    %v171 = vpop.f32.mrb[0].mxu0
    %v172 = vadd.f32 %v39, %v171
    %v173 = vpop.f32.mrb[0].mxu0
    %v174 = vadd.f32 %v43, %v173
    %v175 = vpop.f32.mrb[0].mxu0
    %v176 = vadd.f32 %v39, %v175
    %v177 = vpop.f32.mrb[0].mxu0
    %v178 = vadd.f32 %v43, %v177
    %179 = vmatprep.mubr.bf16.mxu0 0
    %180 = vmatmul.mubr.bf16.gmra.mrb[0].mxu0 %v119
    %v181 = vpop.f32.mrb[0].mxu0
    %v182 = vadd.f32 %v39, %v181
    %v183 = vpop.f32.mrb[0].mxu0
    %v184 = vadd.f32 %v43, %v183
    %v185 = vpop.f32.mrb[0].mxu0
    %v186 = vadd.f32 %v39, %v185
    %v187 = vpop.f32.mrb[0].mxu0
    %v188 = vadd.f32 %v43, %v187
    %189 = vmatprep.mubr.bf16.mxu0 0
    %190 = vmatmul.mubr.bf16.gmra.mrb[0].mxu0 %v122
    %v191 = vpop.f32.mrb[0].mxu0
    %v192 = vadd.f32 %v39, %v191
    %v193 = vpop.f32.mrb[0].mxu0
    %v194 = vadd.f32 %v43, %v193
    %v195 = vpop.f32.mrb[0].mxu0
    %v196 = vadd.f32 %v39, %v195
    %v197 = vpop.f32.mrb[0].mxu0
    %v198 = vadd.f32 %v43, %v197
    %199 = vmatprep.mubr.bf16.mxu0 0
    %200 = vmatmul.mubr.bf16.gmra.mrb[0].mxu0 %v125
    %v201 = vpop.f32.mrb[0].mxu0
    %v202 = vadd.f32 %v39, %v201
    %v203 = vpop.f32.mrb[0].mxu0
    %v204 = vadd.f32 %v43, %v203
    %v205 = vpop.f32.mrb[0].mxu0
    %v206 = vadd.f32 %v39, %v205
    %v207 = vpop.f32.mrb[0].mxu0
    %v208 = vadd.f32 %v43, %v207
    %209 = vdwg.mxu0
    %v210 = vpack.c.bf16 %v166, %v162
    %v211 = vpack.c.bf16 %v168, %v164
    %v212 = vpack.c.bf16 %v176, %v172
    %v213 = vpack.c.bf16 %v178, %v174
    %v214 = vpack.c.bf16 %v186, %v182
    %v215 = vpack.c.bf16 %v188, %v184
    %v216 = vpack.c.bf16 %v196, %v192
    %v217 = vpack.c.bf16 %v198, %v194
    %v218 = vpack.c.bf16 %v206, %v202
    %v219 = vpack.c.bf16 %v208, %v204
    %v230 = vunpack.c.l.b16 %v210
    %v231 = vunpack.c.l.b16 %v211
    %v232 = vunpack.c.h.b16 %v210
    %v233 = vunpack.c.h.b16 %v211
    %v234 = vunpack.c.l.b16 %v212
    %v235 = vunpack.c.l.b16 %v213
    %v236 = vunpack.c.h.b16 %v212
    %v237 = vunpack.c.h.b16 %v213
    %v238 = vunpack.c.l.b16 %v214
    %v239 = vunpack.c.l.b16 %v215
    %v240 = vunpack.c.h.b16 %v214
    %v241 = vunpack.c.h.b16 %v215
    %v242 = vunpack.c.l.b16 %v216
    %v243 = vunpack.c.l.b16 %v217
    %v244 = vunpack.c.h.b16 %v216
    %v245 = vunpack.c.h.b16 %v217
    %v246 = vunpack.c.l.b16 %v218
    %v247 = vunpack.c.l.b16 %v219
    %v248 = vunpack.c.h.b16 %v218
    %v249 = vunpack.c.h.b16 %v219
    %v250 = vpack.c.b16 %v231, %v230
    %v251 = vpack.c.b16 %v233, %v232
    %v252 = vpack.c.b16 %v235, %v234
    %v253 = vpack.c.b16 %v237, %v236
    %v254 = vpack.c.b16 %v239, %v238
    %v255 = vpack.c.b16 %v241, %v240
    %v256 = vpack.c.b16 %v243, %v242
    %v257 = vpack.c.b16 %v245, %v244
    %v258 = vpack.c.b16 %v247, %v246
    %v259 = vpack.c.b16 %v249, %v248
    %vm270 = vcmask 1043456
    %vm271 = vcmask 523268
    %vm272 = vmor %vm271, %vm270
    %273 = vst.msk [vmem:[#allocation2] sm:$0xff] %vm272, %v250
    %274 = vst.msk [vmem:[#allocation2 + $0x8] sm:$0xff] %vm272, %v251
    %275 = vst.msk [vmem:[#allocation2 + $0x10] sm:$0xff] %vm272, %v252
    %276 = vst.msk [vmem:[#allocation2 + $0x18] sm:$0xff] %vm272, %v253
    %277 = vst.msk [vmem:[#allocation2 + $0x20] sm:$0xff] %vm272, %v254
    %278 = vst.msk [vmem:[#allocation2 + $0x28] sm:$0xff] %vm272, %v255
    %279 = vst.msk [vmem:[#allocation2 + $0x30] sm:$0xff] %vm272, %v256
    %280 = vst.msk [vmem:[#allocation2 + $0x38] sm:$0xff] %vm272, %v257
    %281 = vst.msk [vmem:[#allocation2 + $0x40] sm:$0xff] %vm272, %v258
    %282 = vst.msk [vmem:[#allocation2 + $0x48] sm:$0xff] %vm272, %v259
    // Predicated region
    $region14: #{tpu_custom_call.1} parent=1 // pred_check
      _
    $region15: #{tpu_custom_call.1} parent=1 // pred_check_branch
      %284 = sbr.rel (0) target = $region17
    $region16: #{tpu_custom_call.1} parent=1 // pred_region
      %s286 = ssub.s32 1280, 1280
      %287 = vsyncadd [#allocation3], %s286
      %s288 = sshll.u32 [#allocation2], 4
      %s289 = int_to_ptr.vmem [resolvable:$true] %s288
      %294 = dma.vmem_to_hbm [thread:$0]  %s289, 1280, %s3, [#allocation3], 128, 128, 8
    $region17: #{tpu_custom_call.1} parent=1 // pred_fallthru
      _
    // Predicated region
    $region18: #{tpu_custom_call.1} parent=1 // pred_check
      _
    $region19: #{tpu_custom_call.1} parent=1 // pred_check_branch
      %296 = sbr.rel (0) target = $region21
    $region20: #{tpu_custom_call.1} parent=1 // pred_region
      %297 = dma.done [#allocation3], 1280
    $region21: #{tpu_custom_call.1} parent=1 // pred_fallthru
      _
    %298 = vsyncpa [#allocation3], 1

</llo_original>
